<compile_context>
chip_gen: v7x
topology: tpu7x:2x2x1
jax: 0.10.0
libtpu: 0.0.40
codegen_flags: <defaults>
</compile_context>

<pallas_src>
import jax
import jax.numpy as jnp
from jax.experimental import pallas as pl
from jax.experimental.pallas import tpu as pltpu


def _round_up(a, b):
    return ((a + b - 1) // b) * b


def _padded_vmem_bytes(rows, cols, itemsize):
    """VMEM footprint of a 2-D block: sublanes round up to the dtype minimum
    (8 for 4B, 16 for 2B, 32 for 1B dtypes), lanes round up to 128."""
    sub = max(8, 32 // itemsize)
    return _round_up(max(rows, 1), sub) * _round_up(max(cols, 1), 128) * itemsize


def _chip_config():
    """Returns (physical VMEM bytes per core, is_megacore)."""
    vmem_cap = 128 * 1024 * 1024
    megacore = False
    try:
        info = pltpu.get_tpu_info()
        vmem_cap = int(getattr(info, "vmem_capacity_bytes", vmem_cap))
    except Exception:
        pass
    try:
        kind = jax.devices()[0].device_kind.lower()
        # v4 and v7x expose 2 TensorCores per chip; v5e/v6e are single-TC.
        megacore = (("v4" in kind and "lite" not in kind)
                    or "v7" in kind or "7x" in kind)
    except Exception:
        pass
    return vmem_cap, megacore


def _leaky_relu(x, slope=0.2):
    return jnp.where(x > 0, x, slope * x)


def discriminator_kernel(x_ref, w1_ref, b1_ref, w2_ref, b2_ref, w3_ref, b3_ref,
                         o_ref):
    # Layer 1: contract x's feature dim with W1's `in` dim (PyTorch [out, in]
    # layout) -> activations land lane-dense as (H1, tile_n), f32 accumulate.
    # Note: this is w1 @ x^T, so Mosaic inserts an XLU transpose of the x tile;
    # at these shapes the XLU work (~tile_n/16 cyc) stays well below the x-tile
    # HBM DMA time, so the kernel remains HBM-bound and the transpose is hidden.
    h1 = jax.lax.dot_general(
        w1_ref[...], x_ref[...],
        dimension_numbers=(((1,), (1,)), ((), ())),
        preferred_element_type=jnp.float32)
    h1 = _leaky_relu(h1 + b1_ref[...])                       # (H1, tile_n) f32

    # Layer 2: plain MXU matmul, stays lane-dense: (H2, H1) @ (H1, tile_n).
    h2 = jnp.dot(w2_ref[...], h1.astype(w2_ref.dtype),
                 preferred_element_type=jnp.float32)
    h2 = _leaky_relu(h2 + b2_ref[...])                       # (H2, tile_n) f32

    # Layer 3 (output width 1): VPU broadcast-multiply + sublane reduce instead
    # of a 1-wide MXU matmul -> (1, tile_n), directly lane-dense.
    h3 = jnp.sum(h2 * w3_ref[...], axis=0, keepdims=True) + b3_ref[0, 0]

    o_ref[...] = jax.nn.sigmoid(h3).astype(o_ref.dtype)


def discriminator_forward(x, params, *, compute_dtype=jnp.bfloat16):
    """x: [N, D].  params in PyTorch layout: w* = [out, in], b* = [out].

    Streams x / w1 / w2 in `compute_dtype` (default bf16) with f32 MXU
    accumulation and f32 bias / activation / sigmoid math; output keeps x.dtype.
    """
    N, D = x.shape
    H1, H2 = D // 2, D // 4

    cd = jnp.dtype(compute_dtype)
    itemsize = cd.itemsize
    out_itemsize = jnp.dtype(x.dtype).itemsize
    vmem_cap, megacore = _chip_config()

    # ---- batch tile selection (D- and generation-aware) -------------------
    # Target >= ~1 MiB of x HBM traffic per grid step; 128-row aligned so the
    # (1, tile_n) output block stays lane-dense.
    target_bytes = 1 << 20
    tile_n = _round_up(-(-target_bytes // max(1, D * itemsize)), 128)
    tile_n = max(512, tile_n)
    if megacore:
        tile_n *= 2                        # v7x: ~3.2 TB/s HBM -> bigger tiles
    tile_n = min(tile_n, 8192 if megacore else 4096)

    n128 = _round_up(N, 128)
    tile_n = max(128, min(tile_n, n128))   # never larger than the padded batch
    tile_n = (tile_n // 128) * 128

    # Megacore (v7x/v4) only: prefer >= 2 grid steps so both TensorCores get a
    # "parallel" block.  On single-TC v5e/v6e splitting just adds step overhead.
    if megacore and tile_n >= n128 and n128 >= 256:
        tile_n = ((n128 // 2) // 128) * 128

    # VMEM estimate with lane/sublane padding.  wbuf = buffers per resident
    # weight operand (1 once single-buffered via pl.Buffered(1), 2 on fallback).
    def vmem_est(tn, wbuf):
        return (2 * _padded_vmem_bytes(tn, D, itemsize)         # x tile (dbl-buf)
                + 2 * _padded_vmem_bytes(1, tn, out_itemsize)   # out row (dbl-buf)
                + wbuf * (_padded_vmem_bytes(H1, D, itemsize)
                          + _padded_vmem_bytes(H2, H1, itemsize)
                          + _padded_vmem_bytes(H1, 1, 4)
                          + 2 * _padded_vmem_bytes(H2, 1, 4)))

    vmem_budget = int(0.6 * vmem_cap)
    while tile_n > 128 and vmem_est(tile_n, 1) > vmem_budget:
        tile_n = max(128, ((tile_n // 2) // 128) * 128)

    n_pad = _round_up(N, tile_n)
    grid = (n_pad // tile_n,)

    # ---- operand staging ----------------------------------------------------
    xc = x.astype(cd)
    if n_pad != N:
        xc = jnp.pad(xc, ((0, n_pad - N), (0, 0)))

    w1 = params["w1"].astype(cd)                              # (H1, D)
    w2 = params["w2"].astype(cd)                              # (H2, H1)
    b1c = params["b1"].reshape(H1, 1).astype(jnp.float32)
    b2c = params["b2"].reshape(H2, 1).astype(jnp.float32)
    w3c = params["w3"].reshape(H2, 1).astype(jnp.float32)
    b3s = params["b3"].reshape(1, 1).astype(jnp.float32)      # scalar -> SMEM

    flops = 2 * n_pad * (D * H1 + H1 * H2 + H2)
    bytes_accessed = (n_pad * D * itemsize
                      + (H1 * D + H2 * H1) * itemsize
                      + (H1 + 2 * H2 + 1) * 4
                      + n_pad * out_itemsize)
    cost = pl.CostEstimate(flops=flops, transcendentals=n_pad,
                           bytes_accessed=bytes_accessed)

    def build_and_call(single_buffer_weights):
        wkw = ({"pipeline_mode": pl.Buffered(1)}
               if single_buffer_weights else {})
        resident = lambda shape: pl.BlockSpec(shape, lambda i: (0, 0), **wkw)

        wbuf = 1 if single_buffer_weights else 2
        vmem_limit = int(min(0.75 * vmem_cap,
                             max(32 * 1024 * 1024,
                                 2 * vmem_est(tile_n, wbuf))))

        return pl.pallas_call(
            discriminator_kernel,
            out_shape=jax.ShapeDtypeStruct((1, n_pad), x.dtype),
            grid_spec=pltpu.PrefetchScalarGridSpec(
                num_scalar_prefetch=0,
                grid=grid,
                in_specs=[
                    pl.BlockSpec((tile_n, D), lambda i: (i, 0)),        # x tile
                    resident((H1, D)),                                   # w1
                    resident((H1, 1)),                                   # b1 col
                    resident((H2, H1)),                                  # w2
                    resident((H2, 1)),                                   # b2 col
                    resident((H2, 1)),                                   # w3 col
                    pl.BlockSpec(memory_space=pltpu.MemorySpace.SMEM),   # b3
                ],
                out_specs=pl.BlockSpec((1, tile_n), lambda i: (0, i)),   # lane-dense
            ),
            compiler_params=pltpu.CompilerParams(
                dimension_semantics=("parallel",),
                vmem_limit_bytes=vmem_limit),
            cost_estimate=cost,
        )(xc, w1, b1c, w2, b2c, w3c, b3s)

    try:
        out_row = build_and_call(True)      # weights single-buffered
    except Exception:
        # pl.Buffered(1) not supported on this jax build -> default buffering.
        out_row = build_and_call(False)

    return out_row[0, :N].reshape(N, 1)


def init_params(key, input_dim):
    """PyTorch-layout init: W = [out, in] ~ U[-1/sqrt(fan_in), +1/sqrt(fan_in)]."""
    D, H1, H2 = input_dim, input_dim // 2, input_dim // 4
    ks = jax.random.split(key, 6)

    def lin(kw, kb, fan_in, fan_out):
        bound = 1.0 / jnp.sqrt(fan_in)
        w = jax.random.uniform(kw, (fan_out, fan_in), jnp.float32, -bound, bound)
        b = jax.random.uniform(kb, (fan_out,), jnp.float32, -bound, bound)
        return w, b

    w1, b1 = lin(ks[0], ks[1], D, H1)
    w2, b2 = lin(ks[2], ks[3], H1, H2)
    w3, b3 = lin(ks[4], ks[5], H2, 1)
    return {"w1": w1, "b1": b1, "w2": w2, "b2": b2, "w3": w3, "b3": b3}


def reference_forward(x, p):
    hp = jax.lax.Precision.HIGHEST
    h = jnp.dot(x, p["w1"].T, precision=hp) + p["b1"]
    h = jnp.where(h > 0, h, 0.2 * h)
    h = jnp.dot(h, p["w2"].T, precision=hp) + p["b2"]
    h = jnp.where(h > 0, h, 0.2 * h)
    h = jnp.dot(h, p["w3"].T, precision=hp) + p["b3"]
    return jax.nn.sigmoid(h)


if __name__ == "__main__":
    key = jax.random.PRNGKey(0)
    k_x, k_p = jax.random.split(key)

    # Small node-feature batch; N deliberately not a multiple of the tile so the
    # padding path is exercised, input_dim = 32.
    N, D = 200, 32
    x = jax.random.normal(k_x, (N, D), jnp.float32)
    params = init_params(k_p, D)

    ref = reference_forward(x, params)

    # f32-streaming path: tight check against the f32 reference.
    out_f32 = jax.block_until_ready(
        discriminator_forward(x, params, compute_dtype=jnp.float32))
    assert out_f32.shape == (N, 1)
    assert jnp.allclose(out_f32, ref, atol=1e-4, rtol=1e-4), "f32 mismatch vs reference"

    # Default bf16-streaming path (f32 accumulation): looser tolerance.
    out_bf16 = jax.block_until_ready(discriminator_forward(x, params))
    assert out_bf16.shape == (N, 1)
    assert jnp.allclose(out_bf16, ref, atol=2e-2, rtol=2e-2), "bf16 mismatch vs reference"

    print("KERNEL_OK")
</pallas_src>

<mosaic_0001>
module attributes {stable_mosaic.version = 11 : i64} {
  func.func @discriminator_kernel(%arg0: i32, %arg1: memref<256x32xf32, #tpu.memory_space<vmem>>, %arg2: memref<16x32xf32, #tpu.memory_space<vmem>>, %arg3: memref<16x1xf32, #tpu.memory_space<vmem>>, %arg4: memref<8x16xf32, #tpu.memory_space<vmem>>, %arg5: memref<8x1xf32, #tpu.memory_space<vmem>>, %arg6: memref<8x1xf32, #tpu.memory_space<vmem>>, %arg7: memref<1x1xf32, #tpu.memory_space<smem>>, %arg8: memref<1x256xf32, #tpu.memory_space<vmem>>) attributes {dimension_semantics = [#tpu.dimension_semantics<parallel>], iteration_bounds = array<i64: 1>, scalar_prefetch = 0 : i64, scratch_operands = 0 : i64, tpu.core_type = #tpu.core_type<tc>, window_params = [{transform_indices = @transform_0, window_bounds = array<i64: 256, 32>}, {pipeline_mode = #tpu.pipeline_mode<synchronous>, transform_indices = @transform_1, window_bounds = array<i64: 16, 32>}, {pipeline_mode = #tpu.pipeline_mode<synchronous>, transform_indices = @transform_2, window_bounds = array<i64: 16, 1>}, {pipeline_mode = #tpu.pipeline_mode<synchronous>, transform_indices = @transform_3, window_bounds = array<i64: 8, 16>}, {pipeline_mode = #tpu.pipeline_mode<synchronous>, transform_indices = @transform_4, window_bounds = array<i64: 8, 1>}, {pipeline_mode = #tpu.pipeline_mode<synchronous>, transform_indices = @transform_5, window_bounds = array<i64: 8, 1>}, {transform_indices = @transform_6, window_bounds = array<i64: 1, 1>}, {transform_indices = @transform_7, window_bounds = array<i64: 1, 256>}]} {
    %c0 = arith.constant 0 : index
    %c0_0 = arith.constant 0 : index
    %0 = vector.load %arg2[%c0, %c0_0] : memref<16x32xf32, #tpu.memory_space<vmem>>, vector<16x32xf32>
    %c0_1 = arith.constant 0 : index
    %c0_2 = arith.constant 0 : index
    %1 = vector.load %arg1[%c0_1, %c0_2] : memref<256x32xf32, #tpu.memory_space<vmem>>, vector<256x32xf32>
    %cst = arith.constant dense<0.000000e+00> : vector<16x256xf32>
    %2 = tpu.matmul %0, %1, %cst {dimension_numbers = #tpu.dot_dimension_numbers<[1], [1], [0], [0], [0, 0, 1, 0], [], []>} : vector<16x32xf32>, vector<256x32xf32>, vector<16x256xf32> -> vector<16x256xf32>
    %c0_3 = arith.constant 0 : index
    %c0_4 = arith.constant 0 : index
    %3 = vector.load %arg3[%c0_3, %c0_4] : memref<16x1xf32, #tpu.memory_space<vmem>>, vector<16x1xf32>
    %4 = vector.broadcast %3 : vector<16x1xf32> to vector<16x256xf32>
    %5 = arith.addf %2, %4 : vector<16x256xf32>
    %cst_5 = arith.constant 0.000000e+00 : f32
    %6 = vector.broadcast %cst_5 : f32 to vector<16x256xf32>
    %7 = arith.cmpf ogt, %5, %6 : vector<16x256xf32>
    %cst_6 = arith.constant 2.000000e-01 : f32
    %8 = vector.broadcast %cst_6 : f32 to vector<16x256xf32>
    %9 = arith.mulf %8, %5 : vector<16x256xf32>
    %10 = arith.select %7, %5, %9 : vector<16x256xi1>, vector<16x256xf32>
    %c0_7 = arith.constant 0 : index
    %c0_8 = arith.constant 0 : index
    %11 = vector.load %arg4[%c0_7, %c0_8] : memref<8x16xf32, #tpu.memory_space<vmem>>, vector<8x16xf32>
    %cst_9 = arith.constant dense<0.000000e+00> : vector<8x256xf32>
    %12 = tpu.matmul %11, %10, %cst_9 {dimension_numbers = #tpu.dot_dimension_numbers<[1], [0], [0], [1], [0, 0, 1, 1], [], []>} : vector<8x16xf32>, vector<16x256xf32>, vector<8x256xf32> -> vector<8x256xf32>
    %c0_10 = arith.constant 0 : index
    %c0_11 = arith.constant 0 : index
    %13 = vector.load %arg5[%c0_10, %c0_11] : memref<8x1xf32, #tpu.memory_space<vmem>>, vector<8x1xf32>
    %14 = vector.broadcast %13 : vector<8x1xf32> to vector<8x256xf32>
    %15 = arith.addf %12, %14 : vector<8x256xf32>
    %cst_12 = arith.constant 0.000000e+00 : f32
    %16 = vector.broadcast %cst_12 : f32 to vector<8x256xf32>
    %17 = arith.cmpf ogt, %15, %16 : vector<8x256xf32>
    %cst_13 = arith.constant 2.000000e-01 : f32
    %18 = vector.broadcast %cst_13 : f32 to vector<8x256xf32>
    %19 = arith.mulf %18, %15 : vector<8x256xf32>
    %20 = arith.select %17, %15, %19 : vector<8x256xi1>, vector<8x256xf32>
    %c0_14 = arith.constant 0 : index
    %c0_15 = arith.constant 0 : index
    %21 = vector.load %arg6[%c0_14, %c0_15] : memref<8x1xf32, #tpu.memory_space<vmem>>, vector<8x1xf32>
    %22 = vector.broadcast %21 : vector<8x1xf32> to vector<8x256xf32>
    %23 = arith.mulf %20, %22 : vector<8x256xf32>
    %cst_16 = arith.constant dense<0.000000e+00> : vector<256xf32>
    %24 = vector.multi_reduction <add>, %23, %cst_16 [0] : vector<8x256xf32> to vector<256xf32>
    %25 = vector.shape_cast %24 : vector<256xf32> to vector<1x256xf32>
    %c0_17 = arith.constant 0 : index
    %c0_18 = arith.constant 0 : index
    %26 = memref.load %arg7[%c0_17, %c0_18] : memref<1x1xf32, #tpu.memory_space<smem>>
    %27 = vector.broadcast %26 : f32 to vector<1x256xf32>
    %28 = arith.addf %25, %27 : vector<1x256xf32>
    %29 = arith.negf %28 : vector<1x256xf32>
    %30 = math.exp %29 : vector<1x256xf32>
    %cst_19 = arith.constant 1.000000e+00 : f32
    %31 = vector.broadcast %cst_19 : f32 to vector<1x256xf32>
    %32 = arith.addf %31, %30 : vector<1x256xf32>
    %33 = arith.divf %31, %32 : vector<1x256xf32>
    %c0_20 = arith.constant 0 : index
    %c0_21 = arith.constant 0 : index
    %34 = vector.load %arg8[%c0_20, %c0_21] : memref<1x256xf32, #tpu.memory_space<vmem>>, vector<1x256xf32>
    tpu.vector_store %arg8[%c0_20, %c0_21], %33 {strides = array<i32>} : memref<1x256xf32, #tpu.memory_space<vmem>>, vector<1x256xf32>,
    return
  }
  func.func @transform_0(%arg0: i32) -> (i32, i32) {
    %c0_i32 = arith.constant 0 : i32
    %c0_i32_0 = arith.constant 0 : i32
    return %arg0, %c0_i32 : i32, i32
  }
  func.func @transform_1(%arg0: i32) -> (i32, i32) {
    %c0_i32 = arith.constant 0 : i32
    %c0_i32_0 = arith.constant 0 : i32
    %c0_i32_1 = arith.constant 0 : i32
    return %c0_i32, %c0_i32_0 : i32, i32
  }
  func.func @transform_2(%arg0: i32) -> (i32, i32) {
    %c0_i32 = arith.constant 0 : i32
    %c0_i32_0 = arith.constant 0 : i32
    %c0_i32_1 = arith.constant 0 : i32
    return %c0_i32, %c0_i32_0 : i32, i32
  }
  func.func @transform_3(%arg0: i32) -> (i32, i32) {
    %c0_i32 = arith.constant 0 : i32
    %c0_i32_0 = arith.constant 0 : i32
    %c0_i32_1 = arith.constant 0 : i32
    return %c0_i32, %c0_i32_0 : i32, i32
  }
  func.func @transform_4(%arg0: i32) -> (i32, i32) {
    %c0_i32 = arith.constant 0 : i32
    %c0_i32_0 = arith.constant 0 : i32
    %c0_i32_1 = arith.constant 0 : i32
    return %c0_i32, %c0_i32_0 : i32, i32
  }
  func.func @transform_5(%arg0: i32) -> (i32, i32) {
    %c0_i32 = arith.constant 0 : i32
    %c0_i32_0 = arith.constant 0 : i32
    %c0_i32_1 = arith.constant 0 : i32
    return %c0_i32, %c0_i32_0 : i32, i32
  }
  func.func @transform_6(%arg0: i32) -> (i32, i32) {
    %c0_i32 = arith.constant 0 : i32
    %c0_i32_0 = arith.constant 0 : i32
    %c0_i32_1 = arith.constant 0 : i32
    return %c0_i32, %c0_i32_0 : i32, i32
  }
  func.func @transform_7(%arg0: i32) -> (i32, i32) {
    %c0_i32 = arith.constant 0 : i32
    %c0_i32_0 = arith.constant 0 : i32
    return %c0_i32, %arg0 : i32, i32
  }
}

module attributes {stable_mosaic.version = 11 : i64} {
  func.func @discriminator_kernel(%arg0: i32, %arg1: memref<256x32xf32, #tpu.memory_space<vmem>>, %arg2: memref<16x32xf32, #tpu.memory_space<vmem>>, %arg3: memref<16x1xf32, #tpu.memory_space<vmem>>, %arg4: memref<8x16xf32, #tpu.memory_space<vmem>>, %arg5: memref<8x1xf32, #tpu.memory_space<vmem>>, %arg6: memref<8x1xf32, #tpu.memory_space<vmem>>, %arg7: memref<1x1xf32, #tpu.memory_space<smem>>, %arg8: memref<1x256xf32, #tpu.memory_space<vmem>>) attributes {dimension_semantics = [#tpu.dimension_semantics<parallel>], iteration_bounds = array<i64: 1>, scalar_prefetch = 0 : i64, scratch_operands = 0 : i64, tpu.core_type = #tpu.core_type<tc>, window_params = [{transform_indices = @transform_0, window_bounds = array<i64: 256, 32>}, {pipeline_mode = #tpu.pipeline_mode<synchronous>, transform_indices = @transform_1, window_bounds = array<i64: 16, 32>}, {pipeline_mode = #tpu.pipeline_mode<synchronous>, transform_indices = @transform_2, window_bounds = array<i64: 16, 1>}, {pipeline_mode = #tpu.pipeline_mode<synchronous>, transform_indices = @transform_3, window_bounds = array<i64: 8, 16>}, {pipeline_mode = #tpu.pipeline_mode<synchronous>, transform_indices = @transform_4, window_bounds = array<i64: 8, 1>}, {pipeline_mode = #tpu.pipeline_mode<synchronous>, transform_indices = @transform_5, window_bounds = array<i64: 8, 1>}, {transform_indices = @transform_6, window_bounds = array<i64: 1, 1>}, {transform_indices = @transform_7, window_bounds = array<i64: 1, 256>}]} {
    %c0 = arith.constant 0 : index
    %c0_0 = arith.constant 0 : index
    %0 = vector.load %arg2[%c0, %c0_0] : memref<16x32xf32, #tpu.memory_space<vmem>>, vector<16x32xf32>
    %c0_1 = arith.constant 0 : index
    %c0_2 = arith.constant 0 : index
    %1 = vector.load %arg1[%c0_1, %c0_2] : memref<256x32xf32, #tpu.memory_space<vmem>>, vector<256x32xf32>
    %cst = arith.constant dense<0.000000e+00> : vector<16x256xf32>
    %2 = tpu.matmul %0, %1, %cst {dimension_numbers = #tpu.dot_dimension_numbers<[1], [1], [0], [0], [0, 0, 1, 0], [], []>} : vector<16x32xf32>, vector<256x32xf32>, vector<16x256xf32> -> vector<16x256xf32>
    %c0_3 = arith.constant 0 : index
    %c0_4 = arith.constant 0 : index
    %3 = vector.load %arg3[%c0_3, %c0_4] : memref<16x1xf32, #tpu.memory_space<vmem>>, vector<16x1xf32>
    %4 = vector.broadcast %3 : vector<16x1xf32> to vector<16x256xf32>
    %5 = arith.addf %2, %4 : vector<16x256xf32>
    %cst_5 = arith.constant 0.000000e+00 : f32
    %6 = vector.broadcast %cst_5 : f32 to vector<16x256xf32>
    %7 = arith.cmpf ogt, %5, %6 : vector<16x256xf32>
    %cst_6 = arith.constant 2.000000e-01 : f32
    %8 = vector.broadcast %cst_6 : f32 to vector<16x256xf32>
    %9 = arith.mulf %8, %5 : vector<16x256xf32>
    %10 = arith.select %7, %5, %9 : vector<16x256xi1>, vector<16x256xf32>
    %c0_7 = arith.constant 0 : index
    %c0_8 = arith.constant 0 : index
    %11 = vector.load %arg4[%c0_7, %c0_8] : memref<8x16xf32, #tpu.memory_space<vmem>>, vector<8x16xf32>
    %cst_9 = arith.constant dense<0.000000e+00> : vector<8x256xf32>
    %12 = tpu.matmul %11, %10, %cst_9 {dimension_numbers = #tpu.dot_dimension_numbers<[1], [0], [0], [1], [0, 0, 1, 1], [], []>} : vector<8x16xf32>, vector<16x256xf32>, vector<8x256xf32> -> vector<8x256xf32>
    %c0_10 = arith.constant 0 : index
    %c0_11 = arith.constant 0 : index
    %13 = vector.load %arg5[%c0_10, %c0_11] : memref<8x1xf32, #tpu.memory_space<vmem>>, vector<8x1xf32>
    %14 = vector.broadcast %13 : vector<8x1xf32> to vector<8x256xf32>
    %15 = arith.addf %12, %14 : vector<8x256xf32>
    %cst_12 = arith.constant 0.000000e+00 : f32
    %16 = vector.broadcast %cst_12 : f32 to vector<8x256xf32>
    %17 = arith.cmpf ogt, %15, %16 : vector<8x256xf32>
    %cst_13 = arith.constant 2.000000e-01 : f32
    %18 = vector.broadcast %cst_13 : f32 to vector<8x256xf32>
    %19 = arith.mulf %18, %15 : vector<8x256xf32>
    %20 = arith.select %17, %15, %19 : vector<8x256xi1>, vector<8x256xf32>
    %c0_14 = arith.constant 0 : index
    %c0_15 = arith.constant 0 : index
    %21 = vector.load %arg6[%c0_14, %c0_15] : memref<8x1xf32, #tpu.memory_space<vmem>>, vector<8x1xf32>
    %22 = vector.broadcast %21 : vector<8x1xf32> to vector<8x256xf32>
    %23 = arith.mulf %20, %22 : vector<8x256xf32>
    %cst_16 = arith.constant dense<0.000000e+00> : vector<256xf32>
    %24 = vector.multi_reduction <add>, %23, %cst_16 [0] : vector<8x256xf32> to vector<256xf32>
    %25 = vector.shape_cast %24 : vector<256xf32> to vector<1x256xf32>
    %c0_17 = arith.constant 0 : index
    %c0_18 = arith.constant 0 : index
    %26 = memref.load %arg7[%c0_17, %c0_18] : memref<1x1xf32, #tpu.memory_space<smem>>
    %27 = vector.broadcast %26 : f32 to vector<1x256xf32>
    %28 = arith.addf %25, %27 : vector<1x256xf32>
    %29 = arith.negf %28 : vector<1x256xf32>
    %30 = math.exp %29 : vector<1x256xf32>
    %cst_19 = arith.constant 1.000000e+00 : f32
    %31 = vector.broadcast %cst_19 : f32 to vector<1x256xf32>
    %32 = arith.addf %31, %30 : vector<1x256xf32>
    %33 = arith.divf %31, %32 : vector<1x256xf32>
    %c0_20 = arith.constant 0 : index
    %c0_21 = arith.constant 0 : index
    %34 = vector.load %arg8[%c0_20, %c0_21] : memref<1x256xf32, #tpu.memory_space<vmem>>, vector<1x256xf32>
    tpu.vector_store %arg8[%c0_20, %c0_21], %33 {strides = array<i32>} : memref<1x256xf32, #tpu.memory_space<vmem>>, vector<1x256xf32>,
    return
  }
  func.func @transform_0(%arg0: i32) -> (i32, i32) {
    %c0_i32 = arith.constant 0 : i32
    %c0_i32_0 = arith.constant 0 : i32
    return %arg0, %c0_i32 : i32, i32
  }
  func.func @transform_1(%arg0: i32) -> (i32, i32) {
    %c0_i32 = arith.constant 0 : i32
    %c0_i32_0 = arith.constant 0 : i32
    %c0_i32_1 = arith.constant 0 : i32
    return %c0_i32, %c0_i32_0 : i32, i32
  }
  func.func @transform_2(%arg0: i32) -> (i32, i32) {
    %c0_i32 = arith.constant 0 : i32
    %c0_i32_0 = arith.constant 0 : i32
    %c0_i32_1 = arith.constant 0 : i32
    return %c0_i32, %c0_i32_0 : i32, i32
  }
  func.func @transform_3(%arg0: i32) -> (i32, i32) {
    %c0_i32 = arith.constant 0 : i32
    %c0_i32_0 = arith.constant 0 : i32
    %c0_i32_1 = arith.constant 0 : i32
    return %c0_i32, %c0_i32_0 : i32, i32
  }
  func.func @transform_4(%arg0: i32) -> (i32, i32) {
    %c0_i32 = arith.constant 0 : i32
    %c0_i32_0 = arith.constant 0 : i32
    %c0_i32_1 = arith.constant 0 : i32
    return %c0_i32, %c0_i32_0 : i32, i32
  }
  func.func @transform_5(%arg0: i32) -> (i32, i32) {
    %c0_i32 = arith.constant 0 : i32
    %c0_i32_0 = arith.constant 0 : i32
    %c0_i32_1 = arith.constant 0 : i32
    return %c0_i32, %c0_i32_0 : i32, i32
  }
  func.func @transform_6(%arg0: i32) -> (i32, i32) {
    %c0_i32 = arith.constant 0 : i32
    %c0_i32_0 = arith.constant 0 : i32
    %c0_i32_1 = arith.constant 0 : i32
    return %c0_i32, %c0_i32_0 : i32, i32
  }
  func.func @transform_7(%arg0: i32) -> (i32, i32) {
    %c0_i32 = arith.constant 0 : i32
    %c0_i32_0 = arith.constant 0 : i32
    return %c0_i32, %arg0 : i32, i32
  }
}

</mosaic_0001>

<llo_original>
// kernel: tpu_custom_call.1
$region0: #{tpu_custom_call.1}
  #allocation0 [shape = 'u32[]', space=smem, size = 0x4, offset = 0x4, fixed_abs, tag = 'smem constant byte address 0x4 - core index']
  #allocation1 [shape = 'u32[144,128]{1,0:T(1,128)}', space=vmem, size = 0x12000, scoped, tag = 'internal scratch']
  #allocation2 [shape = 'f32[1,1]{1,0:T(1,128)S(6)}', space=smem, size = 0x200, scoped, tag = 'scoped memory for tpu_custom_call.1']
  %s0 = inlined_call_operand.vmem [shape: f32[256,32], index: 0, kind: input, shape index: {}]
  %s1 = inlined_call_operand.vmem [shape: f32[16,32], index: 1, kind: input, shape index: {}]
  %s2 = inlined_call_operand.vmem [shape: f32[16,1], index: 2, kind: input, shape index: {}]
  %s3 = inlined_call_operand.vmem [shape: f32[8,16], index: 3, kind: input, shape index: {}]
  %s4 = inlined_call_operand.vmem [shape: f32[8,1], index: 4, kind: input, shape index: {}]
  %s5 = inlined_call_operand.vmem [shape: f32[8,1], index: 5, kind: input, shape index: {}]
  %s6 = inlined_call_operand.<no memory space> [shape: f32[1,1], index: 6, kind: input, shape index: {}]
  %s7 = inlined_call_operand.hbm [shape: f32[1,256], index: 7, kind: output, shape index: {}]
  %s8 = sld [smem:[#allocation0]]
  $region38: #{tpu_custom_call.1} parent=0
    _
  %s10 = ssub.s32 1, %s8
  %s11 = scalar_select 0, %s10, %s8
  %12 = sst [smem:[#allocation2]] %s6
  $region1: #{tpu_custom_call.1} parent=0
    #allocation3 [shape = 'u8[1024]{0}', space=vmem, size = 0x400, scoped, tag = 'output window, operand 0, single buffered']
    #allocation4 [shape = 's32[1]{0}', space=sflag, size = 0x4, scoped, tag = 'scoped memory for tpu_custom_call.1']
    %13 = vsyncpa [#allocation4], 0
    // Predicated region
    $region2: #{tpu_custom_call.1} parent=1 // pred_check
      _
    $region3: #{tpu_custom_call.1} parent=1 // pred_check_branch
      %15 = sbr.rel (0) target = $region5
    $region4: #{tpu_custom_call.1} parent=1 // pred_region
      _
    $region5: #{tpu_custom_call.1} parent=1 // pred_fallthru
      _
    // Predicated region
    $region6: #{tpu_custom_call.1} parent=1 // pred_check
      _
    $region7: #{tpu_custom_call.1} parent=1 // pred_check_branch
      %17 = sbr.rel (0) target = $region9
    $region8: #{tpu_custom_call.1} parent=1 // pred_region
      _
    $region9: #{tpu_custom_call.1} parent=1 // pred_fallthru
      _
    // Predicated region
    $region10: #{tpu_custom_call.1} parent=1 // pred_check
      _
    $region11: #{tpu_custom_call.1} parent=1 // pred_check_branch
      %19 = sbr.rel (0) target = $region13
    $region12: #{tpu_custom_call.1} parent=1 // pred_region
      _
    $region13: #{tpu_custom_call.1} parent=1 // pred_fallthru
      _
    // Predicated region
    $region14: #{tpu_custom_call.1} parent=1 // pred_check
      _
    $region15: #{tpu_custom_call.1} parent=1 // pred_check_branch
      %21 = sbr.rel (0) target = $region17
    $region16: #{tpu_custom_call.1} parent=1 // pred_region
      _
    $region17: #{tpu_custom_call.1} parent=1 // pred_fallthru
      _
    // Predicated region
    $region18: #{tpu_custom_call.1} parent=1 // pred_check
      _
    $region19: #{tpu_custom_call.1} parent=1 // pred_check_branch
      %23 = sbr.rel (0) target = $region21
    $region20: #{tpu_custom_call.1} parent=1 // pred_region
      _
    $region21: #{tpu_custom_call.1} parent=1 // pred_fallthru
      _
    // Predicated region
    $region22: #{tpu_custom_call.1} parent=1 // pred_check
      _
    $region23: #{tpu_custom_call.1} parent=1 // pred_check_branch
      %25 = sbr.rel (0) target = $region25
    $region24: #{tpu_custom_call.1} parent=1 // pred_region
      _
    $region25: #{tpu_custom_call.1} parent=1 // pred_fallthru
      _
    // Predicated region
    $region26: #{tpu_custom_call.1} parent=1 // pred_check
      _
    $region27: #{tpu_custom_call.1} parent=1 // pred_check_branch
      %27 = sbr.rel (0) target = $region29
    $region28: #{tpu_custom_call.1} parent=1 // pred_region
      _
    $region29: #{tpu_custom_call.1} parent=1 // pred_fallthru
      _
    %v28 = vld [vmem:[%s1] sm:$0xff]
    %v29 = vld [vmem:[%s1 + $0x8] sm:$0xff]
    %v30 = vld [vmem:[%s0] sm:$0xff]
    %v31 = vld [vmem:[%s0 + $0x8] sm:$0xff]
    %v32 = vld [vmem:[%s0 + $0x10] sm:$0xff]
    %v33 = vld [vmem:[%s0 + $0x18] sm:$0xff]
    %v34 = vld [vmem:[%s0 + $0x20] sm:$0xff]
    %v35 = vld [vmem:[%s0 + $0x28] sm:$0xff]
    %v36 = vld [vmem:[%s0 + $0x30] sm:$0xff]
    %v37 = vld [vmem:[%s0 + $0x38] sm:$0xff]
    %v38 = vld [vmem:[%s0 + $0x40] sm:$0xff]
    %v39 = vld [vmem:[%s0 + $0x48] sm:$0xff]
    %v40 = vld [vmem:[%s0 + $0x50] sm:$0xff]
    %v41 = vld [vmem:[%s0 + $0x58] sm:$0xff]
    %v42 = vld [vmem:[%s0 + $0x60] sm:$0xff]
    %v43 = vld [vmem:[%s0 + $0x68] sm:$0xff]
    %v44 = vld [vmem:[%s0 + $0x70] sm:$0xff]
    %v45 = vld [vmem:[%s0 + $0x78] sm:$0xff]
    %v46 = vld [vmem:[%s0 + $0x80] sm:$0xff]
    %v47 = vld [vmem:[%s0 + $0x88] sm:$0xff]
    %v48 = vld [vmem:[%s0 + $0x90] sm:$0xff]
    %v49 = vld [vmem:[%s0 + $0x98] sm:$0xff]
    %v50 = vld [vmem:[%s0 + $0xa0] sm:$0xff]
    %v51 = vld [vmem:[%s0 + $0xa8] sm:$0xff]
    %v52 = vld [vmem:[%s0 + $0xb0] sm:$0xff]
    %v53 = vld [vmem:[%s0 + $0xb8] sm:$0xff]
    %v54 = vld [vmem:[%s0 + $0xc0] sm:$0xff]
    %v55 = vld [vmem:[%s0 + $0xc8] sm:$0xff]
    %v56 = vld [vmem:[%s0 + $0xd0] sm:$0xff]
    %v57 = vld [vmem:[%s0 + $0xd8] sm:$0xff]
    %v58 = vld [vmem:[%s0 + $0xe0] sm:$0xff]
    %v59 = vld [vmem:[%s0 + $0xe8] sm:$0xff]
    %v60 = vld [vmem:[%s0 + $0xf0] sm:$0xff]
    %v61 = vld [vmem:[%s0 + $0xf8] sm:$0xff]
    %v62 = vld [vmem:[%s2] sm:$0xff]
    %v63 = vld [vmem:[%s2 + $0x8] sm:$0xff]
    %65 = vset.pattern.permute.xlu0 0
    %66 = vperm.xlu0 %65, %v62
    %v67 = vpop.permute.xlu0 %66
    %70 = vset.pattern.permute.xlu0 0
    %71 = vperm.xlu0 %70, %v63
    %v72 = vpop.permute.xlu0 %71
    %vm74 = vcmask 261120
    %v76 = vsel %vm74, %v28, 0
    %v79 = vsel %vm74, %v29, 0
    %v82 = vsel %vm74, %v30, 0
    %v85 = vsel %vm74, %v31, 0
    %v88 = vsel %vm74, %v32, 0
    %v91 = vsel %vm74, %v33, 0
    %v94 = vsel %vm74, %v34, 0
    %v97 = vsel %vm74, %v35, 0
    %v100 = vsel %vm74, %v36, 0
    %v103 = vsel %vm74, %v37, 0
    %v106 = vsel %vm74, %v38, 0
    %v109 = vsel %vm74, %v39, 0
    %v112 = vsel %vm74, %v40, 0
    %v115 = vsel %vm74, %v41, 0
    %v118 = vsel %vm74, %v42, 0
    %v121 = vsel %vm74, %v43, 0
    %v124 = vsel %vm74, %v44, 0
    %v127 = vsel %vm74, %v45, 0
    %v130 = vsel %vm74, %v46, 0
    %v133 = vsel %vm74, %v47, 0
    %v136 = vsel %vm74, %v48, 0
    %v139 = vsel %vm74, %v49, 0
    %v142 = vsel %vm74, %v50, 0
    %v145 = vsel %vm74, %v51, 0
    %v148 = vsel %vm74, %v52, 0
    %v151 = vsel %vm74, %v53, 0
    %v154 = vsel %vm74, %v54, 0
    %v157 = vsel %vm74, %v55, 0
    %v160 = vsel %vm74, %v56, 0
    %v163 = vsel %vm74, %v57, 0
    %v166 = vsel %vm74, %v58, 0
    %v169 = vsel %vm74, %v59, 0
    %v172 = vsel %vm74, %v60, 0
    %v175 = vsel %vm74, %v61, 0
    %177 = vmatprep.subr.mxu0 0.0
    %178 = vmatpush1.xpose.msra.mxu0 %v82
    %179 = vmatprep.subr.mxu0 0.0
    %180 = vmatpush1.xpose.msra.mxu0 %v85
    %181 = vmatprep.subr.mxu0 0.0
    %182 = vmatpush1.xpose.msra.mxu0 %v88
    %183 = vmatprep.subr.mxu0 0.0
    %184 = vmatpush1.xpose.msra.mxu0 %v91
    %185 = vmatprep.subr.mxu0 0.0
    %186 = vmatpush1.xpose.msra.mxu0 %v94
    %187 = vmatprep.subr.mxu0 0.0
    %188 = vmatpush1.xpose.msra.mxu0 %v97
    %189 = vmatprep.subr.mxu0 0.0
    %190 = vmatpush1.xpose.msra.mxu0 %v100
    %191 = vmatprep.subr.mxu0 0.0
    %192 = vmatpush1.xpose.msra.mxu0 %v103
    %193 = vmatprep.subr.mxu0 0.0
    %194 = vmatpush1.xpose.msra.mxu0 %v106
    %195 = vmatprep.subr.mxu0 0.0
    %196 = vmatpush1.xpose.msra.mxu0 %v109
    %197 = vmatprep.subr.mxu0 0.0
    %198 = vmatpush1.xpose.msra.mxu0 %v112
    %199 = vmatprep.subr.mxu0 0.0
    %200 = vmatpush1.xpose.msra.mxu0 %v115
    %201 = vmatprep.subr.mxu0 0.0
    %202 = vmatpush1.xpose.msra.mxu0 %v118
    %203 = vmatprep.subr.mxu0 0.0
    %204 = vmatpush1.xpose.msra.mxu0 %v121
    %205 = vmatprep.subr.mxu0 0.0
    %206 = vmatpush1.xpose.msra.mxu0 %v124
    %207 = vmatprep.subr.mxu0 0.0
    %208 = vmatpush1.xpose.msra.mxu0 %v127
    %209 = vmatprep.subr.mxu0 0.0
    %210 = vmatpush1.xpose.msra.mxu0 %v130
    %211 = vmatprep.subr.mxu0 0.0
    %212 = vmatpush1.xpose.msra.mxu0 %v133
    %213 = vmatprep.subr.mxu0 0.0
    %214 = vmatpush1.xpose.msra.mxu0 %v136
    %215 = vmatprep.subr.mxu0 0.0
    %216 = vmatpush1.xpose.msra.mxu0 %v139
    %217 = vmatprep.subr.mxu0 0.0
    %218 = vmatpush1.xpose.msra.mxu0 %v142
    %219 = vmatprep.subr.mxu0 0.0
    %220 = vmatpush1.xpose.msra.mxu0 %v145
    %221 = vmatprep.subr.mxu0 0.0
    %222 = vmatpush1.xpose.msra.mxu0 %v148
    %223 = vmatprep.subr.mxu0 0.0
    %224 = vmatpush1.xpose.msra.mxu0 %v151
    %225 = vmatprep.subr.mxu0 0.0
    %226 = vmatpush1.xpose.msra.mxu0 %v154
    %227 = vmatprep.subr.mxu0 0.0
    %228 = vmatpush1.xpose.msra.mxu0 %v157
    %229 = vmatprep.subr.mxu0 0.0
    %230 = vmatpush1.xpose.msra.mxu0 %v160
    %231 = vmatprep.subr.mxu0 0.0
    %232 = vmatpush1.xpose.msra.mxu0 %v163
    %233 = vmatprep.subr.mxu0 0.0
    %234 = vmatpush1.xpose.msra.mxu0 %v166
    %235 = vmatprep.subr.mxu0 0.0
    %236 = vmatpush1.xpose.msra.mxu0 %v169
    %237 = vmatprep.subr.mxu0 0.0
    %238 = vmatpush1.xpose.msra.mxu0 %v172
    %239 = vmatprep.subr.mxu0 0.0
    %240 = vmatpush1.xpose.msra.mxu0 %v175
    %241 = vmatprep.mubr.f32.mxu0 0.0
    %242 = vmatmul.mubr.f32.gmra.mrb[0].mxu0 %v76
    %v243 = vpop.f32.mrb[0].mxu0
    %v244 = vadd.f32 %v67, %v243
    %v245 = vpop.f32.mrb[0].mxu0
    %v246 = vadd.f32 %v67, %v245
    %247 = vmatprep.mubr.f32.mxu0 0.0
    %248 = vmatmul.mubr.f32.gmra.mrb[0].mxu0 %v79
    %v249 = vpop.f32.mrb[0].mxu0
    %v250 = vadd.f32 %v72, %v249
    %v251 = vpop.f32.mrb[0].mxu0
    %v252 = vadd.f32 %v72, %v251
    %253 = vdwg.mxu0
    %vm254 = vcmp.gt.f32.partialorder %v244, 0.0
    %vm255 = vcmp.gt.f32.partialorder %v246, 0.0
    %vm256 = vcmp.gt.f32.partialorder %v250, 0.0
    %vm257 = vcmp.gt.f32.partialorder %v252, 0.0
    %v258 = vmul.f32 %v244, 0.2
    %v259 = vmul.f32 %v246, 0.2
    %v260 = vmul.f32 %v250, 0.2
    %v261 = vmul.f32 %v252, 0.2
    %v262 = vsel %vm254, %v244, %v258
    %v263 = vsel %vm255, %v246, %v259
    %v264 = vsel %vm256, %v250, %v260
    %v265 = vsel %vm257, %v252, %v261
    %v266 = vld [vmem:[%s3] sm:$0xff]
    %v267 = vld [vmem:[%s4] sm:$0xff]
    %269 = vset.pattern.permute.xlu0 0
    %270 = vperm.xlu0 %269, %v267
    %v271 = vpop.permute.xlu0 %270
    %vm273 = vcmask 130048
    %v275 = vsel %vm273, %v266, 0
    %277 = vmatprep.subr.mxu0 %v263
    %278 = vmatpush1.msra.mxu0 %v262
    %279 = vmatprep.subr.mxu0 %v265
    %280 = vmatpush1.msra.mxu0 %v264
    %281 = vmatprep.subr.mxu0 0.0
    %282 = vmatpush1.msra.mxu0 0.0
    %283 = vmatprep.subr.mxu0 0.0
    %284 = vmatpush1.msra.mxu0 0.0
    %285 = vmatprep.subr.mxu0 0.0
    %286 = vmatpush1.msra.mxu0 0.0
    %287 = vmatprep.subr.mxu0 0.0
    %288 = vmatpush1.msra.mxu0 0.0
    %289 = vmatprep.subr.mxu0 0.0
    %290 = vmatpush1.msra.mxu0 0.0
    %291 = vmatprep.subr.mxu0 0.0
    %292 = vmatpush1.msra.mxu0 0.0
    %293 = vmatprep.subr.mxu0 0.0
    %294 = vmatpush1.msra.mxu0 0.0
    %295 = vmatprep.subr.mxu0 0.0
    %296 = vmatpush1.msra.mxu0 0.0
    %297 = vmatprep.subr.mxu0 0.0
    %298 = vmatpush1.msra.mxu0 0.0
    %299 = vmatprep.subr.mxu0 0.0
    %300 = vmatpush1.msra.mxu0 0.0
    %301 = vmatprep.subr.mxu0 0.0
    %302 = vmatpush1.msra.mxu0 0.0
    %303 = vmatprep.subr.mxu0 0.0
    %304 = vmatpush1.msra.mxu0 0.0
    %305 = vmatprep.subr.mxu0 0.0
    %306 = vmatpush1.msra.mxu0 0.0
    %307 = vmatprep.subr.mxu0 0.0
    %308 = vmatpush1.msra.mxu0 0.0
    %309 = vmatprep.subr.mxu0 0.0
    %310 = vmatpush1.msra.mxu0 0.0
    %311 = vmatprep.subr.mxu0 0.0
    %312 = vmatpush1.msra.mxu0 0.0
    %313 = vmatprep.subr.mxu0 0.0
    %314 = vmatpush1.msra.mxu0 0.0
    %315 = vmatprep.subr.mxu0 0.0
    %316 = vmatpush1.msra.mxu0 0.0
    %317 = vmatprep.subr.mxu0 0.0
    %318 = vmatpush1.msra.mxu0 0.0
    %319 = vmatprep.subr.mxu0 0.0
    %320 = vmatpush1.msra.mxu0 0.0
    %321 = vmatprep.subr.mxu0 0.0
    %322 = vmatpush1.msra.mxu0 0.0
    %323 = vmatprep.subr.mxu0 0.0
    %324 = vmatpush1.msra.mxu0 0.0
    %325 = vmatprep.subr.mxu0 0.0
    %326 = vmatpush1.msra.mxu0 0.0
    %327 = vmatprep.subr.mxu0 0.0
    %328 = vmatpush1.msra.mxu0 0.0
    %329 = vmatprep.subr.mxu0 0.0
    %330 = vmatpush1.msra.mxu0 0.0
    %331 = vmatprep.subr.mxu0 0.0
    %332 = vmatpush1.msra.mxu0 0.0
    %333 = vmatprep.subr.mxu0 0.0
    %334 = vmatpush1.msra.mxu0 0.0
    %335 = vmatprep.subr.mxu0 0.0
    %336 = vmatpush1.msra.mxu0 0.0
    %337 = vmatprep.subr.mxu0 0.0
    %338 = vmatpush1.msra.mxu0 0.0
    %339 = vmatprep.subr.mxu0 0.0
    %340 = vmatpush1.msra.mxu0 0.0
    %341 = vmatprep.mubr.f32.mxu0 0.0
    %342 = vmatmul.mubr.f32.gmra.mrb[0].mxu0 %v275
    %v343 = vpop.f32.mrb[0].mxu0
    %v344 = vadd.f32 %v271, %v343
    %v345 = vpop.f32.mrb[0].mxu0
    %v346 = vadd.f32 %v271, %v345
    %347 = vdwg.mxu0
    %vm348 = vcmp.gt.f32.partialorder %v344, 0.0
    %vm349 = vcmp.gt.f32.partialorder %v346, 0.0
    %v350 = vmul.f32 %v344, 0.2
    %v351 = vmul.f32 %v346, 0.2
    %v352 = vsel %vm348, %v344, %v350
    %v353 = vsel %vm349, %v346, %v351
    %v354 = vld [vmem:[%s5] sm:$0xff]
    %356 = vset.pattern.permute.xlu0 0
    %357 = vperm.xlu0 %356, %v354
    %v358 = vpop.permute.xlu0 %357
    %v360 = vmul.f32 %v352, %v358
    %v361 = vmul.f32 %v353, %v358
    %v362 = vrot.slane %v360, 4
    %v363 = vadd.f32 %v360, %v362
    %v364 = vrot.slane %v363, 2
    %v365 = vadd.f32 %v363, %v364
    %v366 = vrot.slane %v365, 1
    %v367 = vadd.f32 %v365, %v366
    %v368 = vrot.slane %v361, 4
    %v369 = vadd.f32 %v361, %v368
    %v370 = vrot.slane %v369, 2
    %v371 = vadd.f32 %v369, %v370
    %v372 = vrot.slane %v371, 1
    %v373 = vadd.f32 %v371, %v372
    %s374 = sld [smem:[#allocation2]]
    %v375 = vstv %s374
    %v376 = vadd.f32 %v367, %v375
    %v377 = vadd.f32 %v373, %v375
    %v378 = vxor.u32 %v376, 2147483648
    %v379 = vxor.u32 %v377, 2147483648
    %v380 = vmul.f32 %v378, 1.442695
    %v381 = vpow.pop %v380
    %v382 = vmul.f32 %v379, 1.442695
    %v383 = vpow.pop %v382
    %v384 = vadd.f32 %v381, 1.0
    %v385 = vadd.f32 %v383, 1.0
    %v386 = vrcp.pop %v384
    %v387 = vmul.f32 1.0, %v386
    %v388 = vrcp.pop %v385
    %v389 = vmul.f32 1.0, %v388
    %v392 = vcombine.low %v387, %v389
    %v394 = vunpack.c.l.s4 1966171168
    %v395 = vunpack.c.0.s8 %v394
    %v396 = vlaneseq
    %v397 = vshrl.u32 %v396, 7
    %v398 = vsub.s32 %v395, %v397
    %v399 = vrot.slane %v392, %v398
    %v401 = vunpack.c.l.s4 1966171168
    %v402 = vunpack.c.0.s8 %v401
    %v403 = vlaneseq
    %v404 = vshrl.u32 %v403, 7
    %v405 = vsub.s32 %v402, %v404
    %v406 = vrot.slane %v399, %v405
    %v408 = vlaneseq
    %vm409 = vcmp.ge.s32.totalorder %v408, 0
    %vm410 = vcmp.lt.s32.totalorder %v408, 256
    %vm411 = vmand %vm409, %vm410
    %412 = vst.msk [vmem:[#allocation3] sm:$0x3] %vm411, %v406
    // Predicated region
    $region30: #{tpu_custom_call.1} parent=1 // pred_check
      _
    $region31: #{tpu_custom_call.1} parent=1 // pred_check_branch
      %414 = sbr.rel (0) target = $region33
    $region32: #{tpu_custom_call.1} parent=1 // pred_region
      %s416 = ssub.s32 32, 32
      %417 = vsyncadd [#allocation4], %s416
      %s419 = sshll.u32 [#allocation3], 4
      %s420 = int_to_ptr.vmem [resolvable:$true] %s419
      %422 = dma.vmem_to_hbm [thread:$0]  %s420, 32, %s7, [#allocation4]
    $region33: #{tpu_custom_call.1} parent=1 // pred_fallthru
      _
    // Predicated region
    $region34: #{tpu_custom_call.1} parent=1 // pred_check
      _
    $region35: #{tpu_custom_call.1} parent=1 // pred_check_branch
      %424 = sbr.rel (0) target = $region37
    $region36: #{tpu_custom_call.1} parent=1 // pred_region
      %425 = dma.done [#allocation4], 32
    $region37: #{tpu_custom_call.1} parent=1 // pred_fallthru
      _
    %426 = vsyncpa [#allocation4], 1

// kernel: tpu_custom_call.1
$region0: #{tpu_custom_call.1}
  #allocation0 [shape = 'u32[]', space=smem, size = 0x4, offset = 0x4, fixed_abs, tag = 'smem constant byte address 0x4 - core index']
  #allocation1 [shape = 'u32[144,128]{1,0:T(1,128)}', space=vmem, size = 0x12000, scoped, tag = 'internal scratch']
  #allocation2 [shape = 'f32[1,1]{1,0:T(1,128)S(6)}', space=smem, size = 0x200, scoped, tag = 'scoped memory for tpu_custom_call.1']
  %s0 = inlined_call_operand.vmem [shape: f32[256,32], index: 0, kind: input, shape index: {}]
  %s1 = inlined_call_operand.vmem [shape: f32[16,32], index: 1, kind: input, shape index: {}]
  %s2 = inlined_call_operand.vmem [shape: f32[16,1], index: 2, kind: input, shape index: {}]
  %s3 = inlined_call_operand.vmem [shape: f32[8,16], index: 3, kind: input, shape index: {}]
  %s4 = inlined_call_operand.vmem [shape: f32[8,1], index: 4, kind: input, shape index: {}]
  %s5 = inlined_call_operand.vmem [shape: f32[8,1], index: 5, kind: input, shape index: {}]
  %s6 = inlined_call_operand.<no memory space> [shape: f32[1,1], index: 6, kind: input, shape index: {}]
  %s7 = inlined_call_operand.hbm [shape: f32[1,256], index: 7, kind: output, shape index: {}]
  %s8 = sld [smem:[#allocation0]]
  $region38: #{tpu_custom_call.1} parent=0
    _
  %s10 = ssub.s32 1, %s8
  %s11 = scalar_select 0, %s10, %s8
  %12 = sst [smem:[#allocation2]] %s6
  $region1: #{tpu_custom_call.1} parent=0
    #allocation3 [shape = 'u8[1024]{0}', space=vmem, size = 0x400, scoped, tag = 'output window, operand 0, single buffered']
    #allocation4 [shape = 's32[1]{0}', space=sflag, size = 0x4, scoped, tag = 'scoped memory for tpu_custom_call.1']
    %13 = vsyncpa [#allocation4], 0
    // Predicated region
    $region2: #{tpu_custom_call.1} parent=1 // pred_check
      _
    $region3: #{tpu_custom_call.1} parent=1 // pred_check_branch
      %15 = sbr.rel (0) target = $region5
    $region4: #{tpu_custom_call.1} parent=1 // pred_region
      _
    $region5: #{tpu_custom_call.1} parent=1 // pred_fallthru
      _
    // Predicated region
    $region6: #{tpu_custom_call.1} parent=1 // pred_check
      _
    $region7: #{tpu_custom_call.1} parent=1 // pred_check_branch
      %17 = sbr.rel (0) target = $region9
    $region8: #{tpu_custom_call.1} parent=1 // pred_region
      _
    $region9: #{tpu_custom_call.1} parent=1 // pred_fallthru
      _
    // Predicated region
    $region10: #{tpu_custom_call.1} parent=1 // pred_check
      _
    $region11: #{tpu_custom_call.1} parent=1 // pred_check_branch
      %19 = sbr.rel (0) target = $region13
    $region12: #{tpu_custom_call.1} parent=1 // pred_region
      _
    $region13: #{tpu_custom_call.1} parent=1 // pred_fallthru
      _
    // Predicated region
    $region14: #{tpu_custom_call.1} parent=1 // pred_check
      _
    $region15: #{tpu_custom_call.1} parent=1 // pred_check_branch
      %21 = sbr.rel (0) target = $region17
    $region16: #{tpu_custom_call.1} parent=1 // pred_region
      _
    $region17: #{tpu_custom_call.1} parent=1 // pred_fallthru
      _
    // Predicated region
    $region18: #{tpu_custom_call.1} parent=1 // pred_check
      _
    $region19: #{tpu_custom_call.1} parent=1 // pred_check_branch
      %23 = sbr.rel (0) target = $region21
    $region20: #{tpu_custom_call.1} parent=1 // pred_region
      _
    $region21: #{tpu_custom_call.1} parent=1 // pred_fallthru
      _
    // Predicated region
    $region22: #{tpu_custom_call.1} parent=1 // pred_check
      _
    $region23: #{tpu_custom_call.1} parent=1 // pred_check_branch
      %25 = sbr.rel (0) target = $region25
    $region24: #{tpu_custom_call.1} parent=1 // pred_region
      _
    $region25: #{tpu_custom_call.1} parent=1 // pred_fallthru
      _
    // Predicated region
    $region26: #{tpu_custom_call.1} parent=1 // pred_check
      _
    $region27: #{tpu_custom_call.1} parent=1 // pred_check_branch
      %27 = sbr.rel (0) target = $region29
    $region28: #{tpu_custom_call.1} parent=1 // pred_region
      _
    $region29: #{tpu_custom_call.1} parent=1 // pred_fallthru
      _
    %v28 = vld [vmem:[%s1] sm:$0xff]
    %v29 = vld [vmem:[%s1 + $0x8] sm:$0xff]
    %v30 = vld [vmem:[%s0] sm:$0xff]
    %v31 = vld [vmem:[%s0 + $0x8] sm:$0xff]
    %v32 = vld [vmem:[%s0 + $0x10] sm:$0xff]
    %v33 = vld [vmem:[%s0 + $0x18] sm:$0xff]
    %v34 = vld [vmem:[%s0 + $0x20] sm:$0xff]
    %v35 = vld [vmem:[%s0 + $0x28] sm:$0xff]
    %v36 = vld [vmem:[%s0 + $0x30] sm:$0xff]
    %v37 = vld [vmem:[%s0 + $0x38] sm:$0xff]
    %v38 = vld [vmem:[%s0 + $0x40] sm:$0xff]
    %v39 = vld [vmem:[%s0 + $0x48] sm:$0xff]
    %v40 = vld [vmem:[%s0 + $0x50] sm:$0xff]
    %v41 = vld [vmem:[%s0 + $0x58] sm:$0xff]
    %v42 = vld [vmem:[%s0 + $0x60] sm:$0xff]
    %v43 = vld [vmem:[%s0 + $0x68] sm:$0xff]
    %v44 = vld [vmem:[%s0 + $0x70] sm:$0xff]
    %v45 = vld [vmem:[%s0 + $0x78] sm:$0xff]
    %v46 = vld [vmem:[%s0 + $0x80] sm:$0xff]
    %v47 = vld [vmem:[%s0 + $0x88] sm:$0xff]
    %v48 = vld [vmem:[%s0 + $0x90] sm:$0xff]
    %v49 = vld [vmem:[%s0 + $0x98] sm:$0xff]
    %v50 = vld [vmem:[%s0 + $0xa0] sm:$0xff]
    %v51 = vld [vmem:[%s0 + $0xa8] sm:$0xff]
    %v52 = vld [vmem:[%s0 + $0xb0] sm:$0xff]
    %v53 = vld [vmem:[%s0 + $0xb8] sm:$0xff]
    %v54 = vld [vmem:[%s0 + $0xc0] sm:$0xff]
    %v55 = vld [vmem:[%s0 + $0xc8] sm:$0xff]
    %v56 = vld [vmem:[%s0 + $0xd0] sm:$0xff]
    %v57 = vld [vmem:[%s0 + $0xd8] sm:$0xff]
    %v58 = vld [vmem:[%s0 + $0xe0] sm:$0xff]
    %v59 = vld [vmem:[%s0 + $0xe8] sm:$0xff]
    %v60 = vld [vmem:[%s0 + $0xf0] sm:$0xff]
    %v61 = vld [vmem:[%s0 + $0xf8] sm:$0xff]
    %v62 = vld [vmem:[%s2] sm:$0xff]
    %v63 = vld [vmem:[%s2 + $0x8] sm:$0xff]
    %65 = vset.pattern.permute.xlu0 0
    %66 = vperm.xlu0 %65, %v62
    %v67 = vpop.permute.xlu0 %66
    %70 = vset.pattern.permute.xlu0 0
    %71 = vperm.xlu0 %70, %v63
    %v72 = vpop.permute.xlu0 %71
    %vm74 = vcmask 261120
    %v76 = vsel %vm74, %v28, 0
    %v79 = vsel %vm74, %v29, 0
    %v82 = vsel %vm74, %v30, 0
    %v85 = vsel %vm74, %v31, 0
    %v88 = vsel %vm74, %v32, 0
    %v91 = vsel %vm74, %v33, 0
    %v94 = vsel %vm74, %v34, 0
    %v97 = vsel %vm74, %v35, 0
    %v100 = vsel %vm74, %v36, 0
    %v103 = vsel %vm74, %v37, 0
    %v106 = vsel %vm74, %v38, 0
    %v109 = vsel %vm74, %v39, 0
    %v112 = vsel %vm74, %v40, 0
    %v115 = vsel %vm74, %v41, 0
    %v118 = vsel %vm74, %v42, 0
    %v121 = vsel %vm74, %v43, 0
    %v124 = vsel %vm74, %v44, 0
    %v127 = vsel %vm74, %v45, 0
    %v130 = vsel %vm74, %v46, 0
    %v133 = vsel %vm74, %v47, 0
    %v136 = vsel %vm74, %v48, 0
    %v139 = vsel %vm74, %v49, 0
    %v142 = vsel %vm74, %v50, 0
    %v145 = vsel %vm74, %v51, 0
    %v148 = vsel %vm74, %v52, 0
    %v151 = vsel %vm74, %v53, 0
    %v154 = vsel %vm74, %v54, 0
    %v157 = vsel %vm74, %v55, 0
    %v160 = vsel %vm74, %v56, 0
    %v163 = vsel %vm74, %v57, 0
    %v166 = vsel %vm74, %v58, 0
    %v169 = vsel %vm74, %v59, 0
    %v172 = vsel %vm74, %v60, 0
    %v175 = vsel %vm74, %v61, 0
    %177 = vmatprep.subr.mxu0 0.0
    %178 = vmatpush1.xpose.msra.mxu0 %v82
    %179 = vmatprep.subr.mxu0 0.0
    %180 = vmatpush1.xpose.msra.mxu0 %v85
    %181 = vmatprep.subr.mxu0 0.0
    %182 = vmatpush1.xpose.msra.mxu0 %v88
    %183 = vmatprep.subr.mxu0 0.0
    %184 = vmatpush1.xpose.msra.mxu0 %v91
    %185 = vmatprep.subr.mxu0 0.0
    %186 = vmatpush1.xpose.msra.mxu0 %v94
    %187 = vmatprep.subr.mxu0 0.0
    %188 = vmatpush1.xpose.msra.mxu0 %v97
    %189 = vmatprep.subr.mxu0 0.0
    %190 = vmatpush1.xpose.msra.mxu0 %v100
    %191 = vmatprep.subr.mxu0 0.0
    %192 = vmatpush1.xpose.msra.mxu0 %v103
    %193 = vmatprep.subr.mxu0 0.0
    %194 = vmatpush1.xpose.msra.mxu0 %v106
    %195 = vmatprep.subr.mxu0 0.0
    %196 = vmatpush1.xpose.msra.mxu0 %v109
    %197 = vmatprep.subr.mxu0 0.0
    %198 = vmatpush1.xpose.msra.mxu0 %v112
    %199 = vmatprep.subr.mxu0 0.0
    %200 = vmatpush1.xpose.msra.mxu0 %v115
    %201 = vmatprep.subr.mxu0 0.0
    %202 = vmatpush1.xpose.msra.mxu0 %v118
    %203 = vmatprep.subr.mxu0 0.0
    %204 = vmatpush1.xpose.msra.mxu0 %v121
    %205 = vmatprep.subr.mxu0 0.0
    %206 = vmatpush1.xpose.msra.mxu0 %v124
    %207 = vmatprep.subr.mxu0 0.0
    %208 = vmatpush1.xpose.msra.mxu0 %v127
    %209 = vmatprep.subr.mxu0 0.0
    %210 = vmatpush1.xpose.msra.mxu0 %v130
    %211 = vmatprep.subr.mxu0 0.0
    %212 = vmatpush1.xpose.msra.mxu0 %v133
    %213 = vmatprep.subr.mxu0 0.0
    %214 = vmatpush1.xpose.msra.mxu0 %v136
    %215 = vmatprep.subr.mxu0 0.0
    %216 = vmatpush1.xpose.msra.mxu0 %v139
    %217 = vmatprep.subr.mxu0 0.0
    %218 = vmatpush1.xpose.msra.mxu0 %v142
    %219 = vmatprep.subr.mxu0 0.0
    %220 = vmatpush1.xpose.msra.mxu0 %v145
    %221 = vmatprep.subr.mxu0 0.0
    %222 = vmatpush1.xpose.msra.mxu0 %v148
    %223 = vmatprep.subr.mxu0 0.0
    %224 = vmatpush1.xpose.msra.mxu0 %v151
    %225 = vmatprep.subr.mxu0 0.0
    %226 = vmatpush1.xpose.msra.mxu0 %v154
    %227 = vmatprep.subr.mxu0 0.0
    %228 = vmatpush1.xpose.msra.mxu0 %v157
    %229 = vmatprep.subr.mxu0 0.0
    %230 = vmatpush1.xpose.msra.mxu0 %v160
    %231 = vmatprep.subr.mxu0 0.0
    %232 = vmatpush1.xpose.msra.mxu0 %v163
    %233 = vmatprep.subr.mxu0 0.0
    %234 = vmatpush1.xpose.msra.mxu0 %v166
    %235 = vmatprep.subr.mxu0 0.0
    %236 = vmatpush1.xpose.msra.mxu0 %v169
    %237 = vmatprep.subr.mxu0 0.0
    %238 = vmatpush1.xpose.msra.mxu0 %v172
    %239 = vmatprep.subr.mxu0 0.0
    %240 = vmatpush1.xpose.msra.mxu0 %v175
    %241 = vmatprep.mubr.f32.mxu0 0.0
    %242 = vmatmul.mubr.f32.gmra.mrb[0].mxu0 %v76
    %v243 = vpop.f32.mrb[0].mxu0
    %v244 = vadd.f32 %v67, %v243
    %v245 = vpop.f32.mrb[0].mxu0
    %v246 = vadd.f32 %v67, %v245
    %247 = vmatprep.mubr.f32.mxu0 0.0
    %248 = vmatmul.mubr.f32.gmra.mrb[0].mxu0 %v79
    %v249 = vpop.f32.mrb[0].mxu0
    %v250 = vadd.f32 %v72, %v249
    %v251 = vpop.f32.mrb[0].mxu0
    %v252 = vadd.f32 %v72, %v251
    %253 = vdwg.mxu0
    %vm254 = vcmp.gt.f32.partialorder %v244, 0.0
    %vm255 = vcmp.gt.f32.partialorder %v246, 0.0
    %vm256 = vcmp.gt.f32.partialorder %v250, 0.0
    %vm257 = vcmp.gt.f32.partialorder %v252, 0.0
    %v258 = vmul.f32 %v244, 0.2
    %v259 = vmul.f32 %v246, 0.2
    %v260 = vmul.f32 %v250, 0.2
    %v261 = vmul.f32 %v252, 0.2
    %v262 = vsel %vm254, %v244, %v258
    %v263 = vsel %vm255, %v246, %v259
    %v264 = vsel %vm256, %v250, %v260
    %v265 = vsel %vm257, %v252, %v261
    %v266 = vld [vmem:[%s3] sm:$0xff]
    %v267 = vld [vmem:[%s4] sm:$0xff]
    %269 = vset.pattern.permute.xlu0 0
    %270 = vperm.xlu0 %269, %v267
    %v271 = vpop.permute.xlu0 %270
    %vm273 = vcmask 130048
    %v275 = vsel %vm273, %v266, 0
    %277 = vmatprep.subr.mxu0 %v263
    %278 = vmatpush1.msra.mxu0 %v262
    %279 = vmatprep.subr.mxu0 %v265
    %280 = vmatpush1.msra.mxu0 %v264
    %281 = vmatprep.subr.mxu0 0.0
    %282 = vmatpush1.msra.mxu0 0.0
    %283 = vmatprep.subr.mxu0 0.0
    %284 = vmatpush1.msra.mxu0 0.0
    %285 = vmatprep.subr.mxu0 0.0
    %286 = vmatpush1.msra.mxu0 0.0
    %287 = vmatprep.subr.mxu0 0.0
    %288 = vmatpush1.msra.mxu0 0.0
    %289 = vmatprep.subr.mxu0 0.0
    %290 = vmatpush1.msra.mxu0 0.0
    %291 = vmatprep.subr.mxu0 0.0
    %292 = vmatpush1.msra.mxu0 0.0
    %293 = vmatprep.subr.mxu0 0.0
    %294 = vmatpush1.msra.mxu0 0.0
    %295 = vmatprep.subr.mxu0 0.0
    %296 = vmatpush1.msra.mxu0 0.0
    %297 = vmatprep.subr.mxu0 0.0
    %298 = vmatpush1.msra.mxu0 0.0
    %299 = vmatprep.subr.mxu0 0.0
    %300 = vmatpush1.msra.mxu0 0.0
    %301 = vmatprep.subr.mxu0 0.0
    %302 = vmatpush1.msra.mxu0 0.0
    %303 = vmatprep.subr.mxu0 0.0
    %304 = vmatpush1.msra.mxu0 0.0
    %305 = vmatprep.subr.mxu0 0.0
    %306 = vmatpush1.msra.mxu0 0.0
    %307 = vmatprep.subr.mxu0 0.0
    %308 = vmatpush1.msra.mxu0 0.0
    %309 = vmatprep.subr.mxu0 0.0
    %310 = vmatpush1.msra.mxu0 0.0
    %311 = vmatprep.subr.mxu0 0.0
    %312 = vmatpush1.msra.mxu0 0.0
    %313 = vmatprep.subr.mxu0 0.0
    %314 = vmatpush1.msra.mxu0 0.0
    %315 = vmatprep.subr.mxu0 0.0
    %316 = vmatpush1.msra.mxu0 0.0
    %317 = vmatprep.subr.mxu0 0.0
    %318 = vmatpush1.msra.mxu0 0.0
    %319 = vmatprep.subr.mxu0 0.0
    %320 = vmatpush1.msra.mxu0 0.0
    %321 = vmatprep.subr.mxu0 0.0
    %322 = vmatpush1.msra.mxu0 0.0
    %323 = vmatprep.subr.mxu0 0.0
    %324 = vmatpush1.msra.mxu0 0.0
    %325 = vmatprep.subr.mxu0 0.0
    %326 = vmatpush1.msra.mxu0 0.0
    %327 = vmatprep.subr.mxu0 0.0
    %328 = vmatpush1.msra.mxu0 0.0
    %329 = vmatprep.subr.mxu0 0.0
    %330 = vmatpush1.msra.mxu0 0.0
    %331 = vmatprep.subr.mxu0 0.0
    %332 = vmatpush1.msra.mxu0 0.0
    %333 = vmatprep.subr.mxu0 0.0
    %334 = vmatpush1.msra.mxu0 0.0
    %335 = vmatprep.subr.mxu0 0.0
    %336 = vmatpush1.msra.mxu0 0.0
    %337 = vmatprep.subr.mxu0 0.0
    %338 = vmatpush1.msra.mxu0 0.0
    %339 = vmatprep.subr.mxu0 0.0
    %340 = vmatpush1.msra.mxu0 0.0
    %341 = vmatprep.mubr.f32.mxu0 0.0
    %342 = vmatmul.mubr.f32.gmra.mrb[0].mxu0 %v275
    %v343 = vpop.f32.mrb[0].mxu0
    %v344 = vadd.f32 %v271, %v343
    %v345 = vpop.f32.mrb[0].mxu0
    %v346 = vadd.f32 %v271, %v345
    %347 = vdwg.mxu0
    %vm348 = vcmp.gt.f32.partialorder %v344, 0.0
    %vm349 = vcmp.gt.f32.partialorder %v346, 0.0
    %v350 = vmul.f32 %v344, 0.2
    %v351 = vmul.f32 %v346, 0.2
    %v352 = vsel %vm348, %v344, %v350
    %v353 = vsel %vm349, %v346, %v351
    %v354 = vld [vmem:[%s5] sm:$0xff]
    %356 = vset.pattern.permute.xlu0 0
    %357 = vperm.xlu0 %356, %v354
    %v358 = vpop.permute.xlu0 %357
    %v360 = vmul.f32 %v352, %v358
    %v361 = vmul.f32 %v353, %v358
    %v362 = vrot.slane %v360, 4
    %v363 = vadd.f32 %v360, %v362
    %v364 = vrot.slane %v363, 2
    %v365 = vadd.f32 %v363, %v364
    %v366 = vrot.slane %v365, 1
    %v367 = vadd.f32 %v365, %v366
    %v368 = vrot.slane %v361, 4
    %v369 = vadd.f32 %v361, %v368
    %v370 = vrot.slane %v369, 2
    %v371 = vadd.f32 %v369, %v370
    %v372 = vrot.slane %v371, 1
    %v373 = vadd.f32 %v371, %v372
    %s374 = sld [smem:[#allocation2]]
    %v375 = vstv %s374
    %v376 = vadd.f32 %v367, %v375
    %v377 = vadd.f32 %v373, %v375
    %v378 = vxor.u32 %v376, 2147483648
    %v379 = vxor.u32 %v377, 2147483648
    %v380 = vmul.f32 %v378, 1.442695
    %v381 = vpow.pop %v380
    %v382 = vmul.f32 %v379, 1.442695
    %v383 = vpow.pop %v382
    %v384 = vadd.f32 %v381, 1.0
    %v385 = vadd.f32 %v383, 1.0
    %v386 = vrcp.pop %v384
    %v387 = vmul.f32 1.0, %v386
    %v388 = vrcp.pop %v385
    %v389 = vmul.f32 1.0, %v388
    %v392 = vcombine.low %v387, %v389
    %v394 = vunpack.c.l.s4 1966171168
    %v395 = vunpack.c.0.s8 %v394
    %v396 = vlaneseq
    %v397 = vshrl.u32 %v396, 7
    %v398 = vsub.s32 %v395, %v397
    %v399 = vrot.slane %v392, %v398
    %v401 = vunpack.c.l.s4 1966171168
    %v402 = vunpack.c.0.s8 %v401
    %v403 = vlaneseq
    %v404 = vshrl.u32 %v403, 7
    %v405 = vsub.s32 %v402, %v404
    %v406 = vrot.slane %v399, %v405
    %v408 = vlaneseq
    %vm409 = vcmp.ge.s32.totalorder %v408, 0
    %vm410 = vcmp.lt.s32.totalorder %v408, 256
    %vm411 = vmand %vm409, %vm410
    %412 = vst.msk [vmem:[#allocation3] sm:$0x3] %vm411, %v406
    // Predicated region
    $region30: #{tpu_custom_call.1} parent=1 // pred_check
      _
    $region31: #{tpu_custom_call.1} parent=1 // pred_check_branch
      %414 = sbr.rel (0) target = $region33
    $region32: #{tpu_custom_call.1} parent=1 // pred_region
      %s416 = ssub.s32 32, 32
      %417 = vsyncadd [#allocation4], %s416
      %s419 = sshll.u32 [#allocation3], 4
      %s420 = int_to_ptr.vmem [resolvable:$true] %s419
      %422 = dma.vmem_to_hbm [thread:$0]  %s420, 32, %s7, [#allocation4]
    $region33: #{tpu_custom_call.1} parent=1 // pred_fallthru
      _
    // Predicated region
    $region34: #{tpu_custom_call.1} parent=1 // pred_check
      _
    $region35: #{tpu_custom_call.1} parent=1 // pred_check_branch
      %424 = sbr.rel (0) target = $region37
    $region36: #{tpu_custom_call.1} parent=1 // pred_region
      %425 = dma.done [#allocation4], 32
    $region37: #{tpu_custom_call.1} parent=1 // pred_fallthru
      _
    %426 = vsyncpa [#allocation4], 1

</llo_original>
